<compile_context>
chip_gen: v5e
topology: v5e:2x2
jax: 0.10.0
libtpu: 0.0.40
codegen_flags: <defaults>
</compile_context>

<pallas_src>
import math

import jax
import jax.numpy as jnp
from jax.experimental import pallas as pl
from jax.experimental.pallas import tpu as pltpu


def make_pe_buffer(d_model: int, max_len: int = 6) -> jnp.ndarray:
    """Positional-encoding table, same math as the PyTorch __init__ (built once)."""
    position = jnp.arange(0, max_len, dtype=jnp.float32)[:, None]              # (max_len, 1)
    div_term = jnp.exp(
        jnp.arange(0, d_model, 2, dtype=jnp.float32) * -(math.log(10000.0) / d_model)
    )                                                                           # (ceil(d/2),)
    angles = position * div_term                                                # (max_len, ceil(d/2))
    pe = jnp.zeros((max_len, d_model), dtype=jnp.float32)
    pe = pe.at[:, 0::2].set(jnp.sin(angles)[:, : (d_model + 1) // 2])
    pe = pe.at[:, 1::2].set(jnp.cos(angles)[:, : d_model // 2])
    return pe


def _pos_enc_kernel(x_ref, pe_ref, o_ref):
    # y = x + pe[:seq_len]   (dropout p == 0 -> identity)
    seq_len = x_ref.shape[0]
    o_ref[...] = x_ref[...] + pe_ref[0:seq_len, :]


def _make_pos_enc_dropout_kernel(p: float):
    # Training-mode dropout (p > 0): keep iff uniform-u32 < (1-p) * 2^32.
    keep_prob = 1.0 - p
    threshold = jnp.uint32(min(int(keep_prob * float(2 ** 32)), 2 ** 32 - 1))
    scale = jnp.float32(1.0 / keep_prob)

    def kernel(seed_ref, x_ref, pe_ref, o_ref):
        seq_len = x_ref.shape[0]
        pltpu.prng_seed(seed_ref[0])
        bits = pltpu.bitcast(pltpu.prng_random_bits(x_ref.shape), jnp.uint32)
        y = x_ref[...] + pe_ref[0:seq_len, :]
        o_ref[...] = jnp.where(bits < threshold, y * scale, 0.0).astype(o_ref.dtype)

    return kernel


_VMEM = pl.BlockSpec(memory_space=pltpu.MemorySpace.VMEM)
_SMEM = pl.BlockSpec(memory_space=pltpu.MemorySpace.SMEM)


def positional_encoding_forward(x: jnp.ndarray,
                                pe: jnp.ndarray,
                                *,
                                dropout_p: float = 0.0,
                                seed=None) -> jnp.ndarray:
    """x: (seq_len, d_model) f32; pe: (max_len, d_model) f32; seq_len <= max_len."""
    seq_len, d_model = x.shape
    out_shape = jax.ShapeDtypeStruct((seq_len, d_model), x.dtype)

    if dropout_p == 0.0:
        # Single gridless invocation: whole x / pe / out live in VMEM (a few KB).
        return pl.pallas_call(
            _pos_enc_kernel,
            out_shape=out_shape,
            in_specs=[_VMEM, _VMEM],
            out_specs=_VMEM,
        )(x, pe)

    # p > 0 (not used by this module's config, which has p = 0).
    if seed is None:
        seed = jnp.zeros((1,), jnp.int32)
    seed = jnp.asarray(seed, jnp.int32).reshape((1,))
    return pl.pallas_call(
        _make_pos_enc_dropout_kernel(dropout_p),
        out_shape=out_shape,
        in_specs=[_SMEM, _VMEM, _VMEM],
        out_specs=_VMEM,
    )(seed, x, pe)


if __name__ == "__main__":
    D_MODEL = 100   # pe = PositionalEncoding(100, 0)
    MAX_LEN = 6
    SEQ = 6         # x.size(0) <= max_len

    pe_buf = make_pe_buffer(D_MODEL, MAX_LEN)

    key = jax.random.PRNGKey(0)
    x = jax.random.normal(key, (SEQ, D_MODEL), dtype=jnp.float32)

    out = positional_encoding_forward(x, pe_buf, dropout_p=0.0)
    out = jax.block_until_ready(out)

    # sanity check against plain-JAX reference (dropout p=0 is identity)
    ref = x + pe_buf[:SEQ]
    assert out.shape == (SEQ, D_MODEL)
    assert jnp.allclose(out, ref, atol=1e-6), "mismatch vs reference"

    print("KERNEL_OK")
</pallas_src>

<mosaic_0001>
module attributes {stable_mosaic.version = 11 : i64} {
  func.func @_pos_enc_kernel(%arg0: memref<6x100xf32, #tpu.memory_space<vmem>>, %arg1: memref<6x100xf32, #tpu.memory_space<vmem>>, %arg2: memref<6x100xf32, #tpu.memory_space<vmem>>) attributes {dimension_semantics = [], scalar_prefetch = 0 : i64, scratch_operands = 0 : i64, tpu.core_type = #tpu.core_type<tc>} {
    %c0 = arith.constant 0 : index
    %c0_0 = arith.constant 0 : index
    %0 = vector.load %arg0[%c0, %c0_0] : memref<6x100xf32, #tpu.memory_space<vmem>>, vector<6x100xf32>
    %c0_1 = arith.constant 0 : index
    %c0_2 = arith.constant 0 : index
    %1 = vector.load %arg1[%c0_1, %c0_2] : memref<6x100xf32, #tpu.memory_space<vmem>>, vector<6x100xf32>
    %2 = arith.addf %0, %1 : vector<6x100xf32>
    %c0_3 = arith.constant 0 : index
    %c0_4 = arith.constant 0 : index
    %3 = vector.load %arg2[%c0_3, %c0_4] : memref<6x100xf32, #tpu.memory_space<vmem>>, vector<6x100xf32>
    tpu.vector_store %arg2[%c0_3, %c0_4], %2 {strides = array<i32>} : memref<6x100xf32, #tpu.memory_space<vmem>>, vector<6x100xf32>,
    return
  }
}

</mosaic_0001>

<llo_original>
// kernel: tpu_custom_call.1
$region0: #{tpu_custom_call.1}
  #allocation0 [shape = 'u32[]', space=smem, size = 0x4, offset = 0x4, fixed_abs, tag = 'smem constant byte address 0x4 - core index']
  #allocation1 [shape = 'u32[72,128]{1,0:T(1,128)}', space=vmem, size = 0x9000, scoped, tag = 'internal scratch']
  %s0 = inlined_call_operand.hbm [shape: f32[6,100], index: 0, kind: input, shape index: {}]
  %s1 = inlined_call_operand.hbm [shape: f32[6,100], index: 1, kind: input, shape index: {}]
  %s2 = inlined_call_operand.hbm [shape: f32[6,100], index: 2, kind: output, shape index: {}]
  %s3 = sld [smem:[#allocation0]]
  $region26: #{tpu_custom_call.1} parent=0
    _
  %s5 = ssub.s32 1, %s3
  %s6 = scalar_select 0, %s5, %s3
  $region1: #{tpu_custom_call.1} parent=0
    #allocation2 [shape = 'u8[4096]{0}', space=vmem, size = 0x1000, scoped, tag = 'input window, operand 0, single buffered']
    #allocation3 [shape = 's32[1]{0}', space=sflag, size = 0x4, scoped, tag = 'scoped memory for tpu_custom_call.1']
    #allocation4 [shape = 's32[1]{0}', space=sflag, size = 0x4, scoped, tag = 'scoped memory for tpu_custom_call.1']
    #allocation5 [shape = 'u8[4096]{0}', space=vmem, size = 0x1000, scoped, tag = 'input window, operand 1, single buffered']
    #allocation6 [shape = 's32[1]{0}', space=sflag, size = 0x4, scoped, tag = 'scoped memory for tpu_custom_call.1']
    #allocation7 [shape = 'u8[4096]{0}', space=vmem, size = 0x1000, scoped, tag = 'output window, operand 0, single buffered']
    %7 = vsyncpa [#allocation3], 0
    %8 = vsyncpa [#allocation6], 0
    %9 = vsyncpa [#allocation4], 0
    // Predicated region
    $region2: #{tpu_custom_call.1} parent=1 // pred_check
      _
    $region3: #{tpu_custom_call.1} parent=1 // pred_check_branch
      %11 = sbr.rel (0) target = $region5
    $region4: #{tpu_custom_call.1} parent=1 // pred_region
      %13 = vsyncadd [#allocation3], 0
      %s15 = sshll.u32 %s0, 4
      %s16 = int_to_ptr.hbm [resolvable:$true] %s15
      %s17 = sshll.u32 [#allocation2], 4
      %s18 = int_to_ptr.vmem [resolvable:$true] %s17
      %20 = dma.hbm_to_vmem [thread:$0]  %s16, 128, %s18, [#allocation3]
    $region5: #{tpu_custom_call.1} parent=1 // pred_fallthru
      _
    // Predicated region
    $region6: #{tpu_custom_call.1} parent=1 // pred_check
      _
    $region7: #{tpu_custom_call.1} parent=1 // pred_check_branch
      %22 = sbr.rel (0) target = $region9
    $region8: #{tpu_custom_call.1} parent=1 // pred_region
      %24 = vsyncadd [#allocation6], 0
      %s26 = sshll.u32 %s1, 4
      %s27 = int_to_ptr.hbm [resolvable:$true] %s26
      %s28 = sshll.u32 [#allocation5], 4
      %s29 = int_to_ptr.vmem [resolvable:$true] %s28
      %31 = dma.hbm_to_vmem [thread:$0]  %s27, 128, %s29, [#allocation6]
    $region9: #{tpu_custom_call.1} parent=1 // pred_fallthru
      _
    // Predicated region
    $region10: #{tpu_custom_call.1} parent=1 // pred_check
      _
    $region11: #{tpu_custom_call.1} parent=1 // pred_check_branch
      %33 = sbr.rel (0) target = $region13
    $region12: #{tpu_custom_call.1} parent=1 // pred_region
      %35 = dma.done [#allocation3], 128
    $region13: #{tpu_custom_call.1} parent=1 // pred_fallthru
      _
    // Predicated region
    $region14: #{tpu_custom_call.1} parent=1 // pred_check
      _
    $region15: #{tpu_custom_call.1} parent=1 // pred_check_branch
      %37 = sbr.rel (0) target = $region17
    $region16: #{tpu_custom_call.1} parent=1 // pred_region
      %39 = dma.done [#allocation6], 128
    $region17: #{tpu_custom_call.1} parent=1 // pred_fallthru
      _
    %v40 = vld [vmem:[#allocation2] sm:$0x3f]
    %v41 = vld [vmem:[#allocation5] sm:$0x3f]
    %v42 = vadd.f32 %v40, %v41
    %vm43 = vcmask 816128
    %44 = vst.msk [vmem:[#allocation7] sm:$0x3f] %vm43, %v42
    // Predicated region
    $region18: #{tpu_custom_call.1} parent=1 // pred_check
      _
    $region19: #{tpu_custom_call.1} parent=1 // pred_check_branch
      %46 = sbr.rel (0) target = $region21
    $region20: #{tpu_custom_call.1} parent=1 // pred_region
      %48 = vsyncadd [#allocation4], 0
      %s50 = sshll.u32 [#allocation7], 4
      %s51 = int_to_ptr.vmem [resolvable:$true] %s50
      %s52 = sshll.u32 %s2, 4
      %s53 = int_to_ptr.hbm [resolvable:$true] %s52
      %55 = dma.vmem_to_hbm [thread:$0]  %s51, 128, %s53, [#allocation4]
    $region21: #{tpu_custom_call.1} parent=1 // pred_fallthru
      _
    // Predicated region
    $region22: #{tpu_custom_call.1} parent=1 // pred_check
      _
    $region23: #{tpu_custom_call.1} parent=1 // pred_check_branch
      %57 = sbr.rel (0) target = $region25
    $region24: #{tpu_custom_call.1} parent=1 // pred_region
      %59 = dma.done [#allocation4], 128
    $region25: #{tpu_custom_call.1} parent=1 // pred_fallthru
      _
    %60 = vsyncpa [#allocation3], 1
    %61 = vsyncpa [#allocation6], 1
    %62 = vsyncpa [#allocation4], 1

</llo_original>
